<compile_context>
chip_gen: v6e
topology: v6e:2x2x1
jax: 0.10.0
libtpu: 0.0.40
codegen_flags: <defaults>
</compile_context>

<pallas_src>
import functools

import jax
import jax.numpy as jnp
import numpy as np
from jax.experimental import pallas as pl
from jax.experimental.pallas import tpu as pltpu


def _ldam_kernel(x_ref, tgt_ref, m_ref, loss_ref, *, s: float):
    x = x_ref[...].astype(jnp.float32)            # (TILE_N, C)
    tgt = tgt_ref[...]                            # (TILE_N, 1) int32
    m = m_ref[...].astype(jnp.float32)            # (1, C)

    tn, c = x.shape
    col_ids = jax.lax.broadcasted_iota(jnp.int32, (tn, c), 1)
    onehot = (col_ids == tgt).astype(jnp.float32)               # (TILE_N, C)

    # Margin applies only at the true-class column: x - onehot * m
    # (equivalent to where(index, x - batch_m, x), without the batch_m reduction).
    logits = s * (x - onehot * m)                               # (TILE_N, C)

    # Per-row cross entropy: logsumexp(logits) - logits[target]
    row_max = jnp.max(logits, axis=1, keepdims=True)
    lse = jnp.log(jnp.sum(jnp.exp(logits - row_max), axis=1, keepdims=True)) + row_max
    true_logit = jnp.sum(onehot * logits, axis=1, keepdims=True)

    loss_ref[...] = lse - true_logit                            # (TILE_N, 1)


def _round_up(v, m):
    return (v + m - 1) // m * m


def ldam_loss_pallas(x, target, m_list, s: float = 30.0, tile_n: int = 512):
    n, c = x.shape
    tgt2d = target.reshape(n, 1).astype(jnp.int32)
    m2d = m_list.reshape(1, c).astype(jnp.float32)

    # Tile sizing: sublane dim must be a multiple of 8; keep the per-tile f32
    # working set (double-buffered x + a few (TILE_N, C) f32 temporaries) well
    # under the v7x 64 MiB VMEM budget (conservatively ~16 MiB).
    tile_n = min(int(tile_n), _round_up(n, 8))
    tile_n = max(8, _round_up(tile_n, 8))
    bytes_per_row = c * (2 * x.dtype.itemsize + 4 * 4)
    while tile_n > 8 and tile_n * bytes_per_row > 16 * 1024 * 1024:
        tile_n = max(8, _round_up(tile_n // 2, 8))

    grid = (pl.cdiv(n, tile_n),)

    losses = pl.pallas_call(
        functools.partial(_ldam_kernel, s=float(s)),
        grid=grid,
        out_shape=jax.ShapeDtypeStruct((n, 1), jnp.float32),
        in_specs=[
            pl.BlockSpec((tile_n, c), lambda i: (i, 0)),   # x tile
            pl.BlockSpec((tile_n, 1), lambda i: (i, 0)),   # target tile
            pl.BlockSpec((1, c), lambda i: (0, 0)),        # m_list (resident)
        ],
        out_specs=pl.BlockSpec((tile_n, 1), lambda i: (i, 0)),
        compiler_params=pltpu.CompilerParams(
            dimension_semantics=("parallel",),
            vmem_limit_bytes=48 * 1024 * 1024,
        ),
    )(x, tgt2d, m2d)

    # Mean over the true global N (partial last tile is clipped on write-back).
    return jnp.sum(losses[:, 0]) / float(n)


def ldam_loss_ref(x, target, m_list, s: float = 30.0):
    """Pure-JAX reference mirroring the PyTorch forward."""
    n, c = x.shape
    xf = x.astype(jnp.float32)
    onehot = jax.nn.one_hot(target, c, dtype=jnp.float32)
    batch_m = (onehot * m_list[None, :]).sum(axis=1, keepdims=True)
    x_m = xf - batch_m
    output = jnp.where(onehot > 0, x_m, xf)
    logits = s * output
    lse = jax.scipy.special.logsumexp(logits, axis=1)
    true_logit = jnp.take_along_axis(logits, target[:, None], axis=1)[:, 0]
    return jnp.mean(lse - true_logit)


if __name__ == "__main__":
    # Deterministic parameter setup, mirroring LDAMLoss.__init__
    num_classes = 16
    max_m = 0.5
    s = 30.0
    cls_num_list = np.array([100, 80, 60, 50, 40, 30, 25, 20,
                             15, 12, 10, 8, 6, 5, 4, 2], dtype=np.float64)
    m_list_np = 1.0 / np.sqrt(np.sqrt(cls_num_list))
    m_list_np = m_list_np * (max_m / np.max(m_list_np))
    m_list = jnp.asarray(m_list_np, dtype=jnp.float32)        # (C,)

    key = jax.random.PRNGKey(0)

    # Case 1: small batch, single tile (batch=8, C=16), f32.
    k1, k2, k3, k4 = jax.random.split(key, 4)
    x1 = jax.random.normal(k1, (8, num_classes), dtype=jnp.float32)
    t1 = jax.random.randint(k2, (8,), 0, num_classes, dtype=jnp.int32)
    loss1 = jax.block_until_ready(ldam_loss_pallas(x1, t1, m_list, s=s))
    ref1 = jax.block_until_ready(ldam_loss_ref(x1, t1, m_list, s=s))
    np.testing.assert_allclose(np.asarray(loss1), np.asarray(ref1),
                               rtol=1e-5, atol=1e-5)

    # Case 2: batch not a multiple of the tile (batch=50, tile_n=16) ->
    # multi-step grid with a clipped partial last tile.
    x2 = jax.random.normal(k3, (50, num_classes), dtype=jnp.float32)
    t2 = jax.random.randint(k4, (50,), 0, num_classes, dtype=jnp.int32)
    loss2 = jax.block_until_ready(ldam_loss_pallas(x2, t2, m_list, s=s, tile_n=16))
    ref2 = jax.block_until_ready(ldam_loss_ref(x2, t2, m_list, s=s))
    np.testing.assert_allclose(np.asarray(loss2), np.asarray(ref2),
                               rtol=1e-5, atol=1e-5)

    print("KERNEL_OK")
</pallas_src>

<mosaic_0001>
module attributes {stable_mosaic.version = 11 : i64} {
  func.func @_ldam_kernel(%arg0: i32, %arg1: memref<8x16xf32, #tpu.memory_space<vmem>>, %arg2: memref<8x1xi32, #tpu.memory_space<vmem>>, %arg3: memref<1x16xf32, #tpu.memory_space<vmem>>, %arg4: memref<8x1xf32, #tpu.memory_space<vmem>>) attributes {dimension_semantics = [#tpu.dimension_semantics<parallel>], iteration_bounds = array<i64: 1>, scalar_prefetch = 0 : i64, scratch_operands = 0 : i64, tpu.core_type = #tpu.core_type<tc>, window_params = [{transform_indices = @transform_0, window_bounds = array<i64: 8, 16>}, {transform_indices = @transform_1, window_bounds = array<i64: 8, 1>}, {pipeline_mode = #tpu.pipeline_mode<synchronous>, transform_indices = @transform_2, window_bounds = array<i64: 1, 16>}, {transform_indices = @transform_3, window_bounds = array<i64: 8, 1>}]} {
    %c0 = arith.constant 0 : index
    %c0_0 = arith.constant 0 : index
    %0 = vector.load %arg1[%c0, %c0_0] : memref<8x16xf32, #tpu.memory_space<vmem>>, vector<8x16xf32>
    %c0_1 = arith.constant 0 : index
    %c0_2 = arith.constant 0 : index
    %1 = vector.load %arg2[%c0_1, %c0_2] : memref<8x1xi32, #tpu.memory_space<vmem>>, vector<8x1xi32>
    %c0_3 = arith.constant 0 : index
    %c0_4 = arith.constant 0 : index
    %2 = vector.load %arg3[%c0_3, %c0_4] : memref<1x16xf32, #tpu.memory_space<vmem>>, vector<1x16xf32>
    %3 = tpu.iota {dimensions = array<i32: 1>} : vector<8x16xi32>
    %4 = vector.broadcast %1 : vector<8x1xi32> to vector<8x16xi32>
    %5 = arith.cmpi eq, %3, %4 : vector<8x16xi32>
    %6 = arith.extui %5 : vector<8x16xi1> to vector<8x16xi32>
    %7 = arith.sitofp %6 : vector<8x16xi32> to vector<8x16xf32>
    %8 = vector.broadcast %2 : vector<1x16xf32> to vector<8x16xf32>
    %9 = arith.mulf %7, %8 : vector<8x16xf32>
    %10 = arith.subf %0, %9 : vector<8x16xf32>
    %cst = arith.constant 3.000000e+01 : f32
    %11 = vector.broadcast %cst : f32 to vector<8x16xf32>
    %12 = arith.mulf %11, %10 : vector<8x16xf32>
    %cst_5 = arith.constant dense<0xFF800000> : vector<8xf32>
    %13 = vector.multi_reduction <maximumf>, %12, %cst_5 [1] : vector<8x16xf32> to vector<8xf32>
    %14 = vector.shape_cast %13 : vector<8xf32> to vector<8x1xf32>
    %15 = vector.broadcast %14 : vector<8x1xf32> to vector<8x16xf32>
    %16 = arith.subf %12, %15 : vector<8x16xf32>
    %17 = math.exp %16 : vector<8x16xf32>
    %cst_6 = arith.constant dense<0.000000e+00> : vector<8xf32>
    %18 = vector.multi_reduction <add>, %17, %cst_6 [1] : vector<8x16xf32> to vector<8xf32>
    %19 = vector.shape_cast %18 : vector<8xf32> to vector<8x1xf32>
    %20 = math.log %19 : vector<8x1xf32>
    %21 = arith.addf %20, %14 : vector<8x1xf32>
    %22 = arith.mulf %7, %12 : vector<8x16xf32>
    %cst_7 = arith.constant dense<0.000000e+00> : vector<8xf32>
    %23 = vector.multi_reduction <add>, %22, %cst_7 [1] : vector<8x16xf32> to vector<8xf32>
    %24 = vector.shape_cast %23 : vector<8xf32> to vector<8x1xf32>
    %25 = arith.subf %21, %24 : vector<8x1xf32>
    %c0_8 = arith.constant 0 : index
    %c0_9 = arith.constant 0 : index
    %26 = vector.load %arg4[%c0_8, %c0_9] : memref<8x1xf32, #tpu.memory_space<vmem>>, vector<8x1xf32>
    tpu.vector_store %arg4[%c0_8, %c0_9], %25 {strides = array<i32>} : memref<8x1xf32, #tpu.memory_space<vmem>>, vector<8x1xf32>,
    return
  }
  func.func @transform_0(%arg0: i32) -> (i32, i32) {
    %c0_i32 = arith.constant 0 : i32
    %c0_i32_0 = arith.constant 0 : i32
    return %arg0, %c0_i32 : i32, i32
  }
  func.func @transform_1(%arg0: i32) -> (i32, i32) {
    %c0_i32 = arith.constant 0 : i32
    %c0_i32_0 = arith.constant 0 : i32
    return %arg0, %c0_i32 : i32, i32
  }
  func.func @transform_2(%arg0: i32) -> (i32, i32) {
    %c0_i32 = arith.constant 0 : i32
    %c0_i32_0 = arith.constant 0 : i32
    %c0_i32_1 = arith.constant 0 : i32
    return %c0_i32, %c0_i32_0 : i32, i32
  }
  func.func @transform_3(%arg0: i32) -> (i32, i32) {
    %c0_i32 = arith.constant 0 : i32
    %c0_i32_0 = arith.constant 0 : i32
    return %arg0, %c0_i32 : i32, i32
  }
}

</mosaic_0001>

<llo_original>
// kernel: tpu_custom_call.1
$region0: #{tpu_custom_call.1}
  #allocation0 [shape = 'u32[]', space=smem, size = 0x4, offset = 0x4, fixed_abs, tag = 'smem constant byte address 0x4 - core index']
  #allocation1 [shape = 'u32[144,128]{1,0:T(1,128)}', space=vmem, size = 0x12000, scoped, tag = 'internal scratch']
  %s0 = inlined_call_operand.vmem [shape: f32[8,16], index: 0, kind: input, shape index: {}]
  %s1 = inlined_call_operand.vmem [shape: s32[8,1], index: 1, kind: input, shape index: {}]
  %s2 = inlined_call_operand.vmem [shape: f32[1,16], index: 2, kind: input, shape index: {}]
  %s3 = inlined_call_operand.vmem [shape: f32[8,1], index: 3, kind: output, shape index: {}]
  %s4 = sld [smem:[#allocation0]]
  $region22: #{tpu_custom_call.1} parent=0
    _
  %s6 = ssub.s32 1, %s4
  %s7 = scalar_select 0, %s6, %s4
  // Predicated region
  $region2: #{tpu_custom_call.1} parent=0 // pred_check
    _
  $region3: #{tpu_custom_call.1} parent=0 // pred_check_branch
    %9 = sbr.rel (0) target = $region5
  $region4: #{tpu_custom_call.1} parent=0 // pred_region
    _
  $region5: #{tpu_custom_call.1} parent=0 // pred_fallthru
    _
  // Predicated region
  $region6: #{tpu_custom_call.1} parent=0 // pred_check
    _
  $region7: #{tpu_custom_call.1} parent=0 // pred_check_branch
    %11 = sbr.rel (0) target = $region9
  $region8: #{tpu_custom_call.1} parent=0 // pred_region
    _
  $region9: #{tpu_custom_call.1} parent=0 // pred_fallthru
    _
  // Predicated region
  $region10: #{tpu_custom_call.1} parent=0 // pred_check
    _
  $region11: #{tpu_custom_call.1} parent=0 // pred_check_branch
    %13 = sbr.rel (0) target = $region13
  $region12: #{tpu_custom_call.1} parent=0 // pred_region
    _
  $region13: #{tpu_custom_call.1} parent=0 // pred_fallthru
    _
  %v14 = vld [vmem:[%s0] sm:$0xff]
  %v15 = vld [vmem:[%s1] sm:$0xff]
  %v16 = vld [vmem:[%s2] sm:$0x1]
  %v17 = vlaneseq
  %v18 = vand.u32 %v17, 127
  %19 = vset.pattern.permute.xlu0 0
  %20 = vperm.xlu0 %19, %v15
  %v21 = vpop.permute.xlu0 %20
  %vm22 = vcmp.eq.s32.totalorder %v18, %v21
  %v23 = vsel %vm22, 1, 0
  %v24 = vcvt.s32.f32 %v23
  %v26 = vlaneseq
  %v27 = vshrl.u32 %v26, 7
  %v28 = vsub.s32 0, %v27
  %v29 = vrot.slane %v16, %v28
  %v31 = vmul.f32 %v24, %v29
  %v32 = vsub.f32 %v14, %v31
  %v33 = vmul.f32 %v32, 30.0
  %vm34 = vcmask 130048
  %v35 = vsel %vm34, %v33, -inf
  %36 = vmax.xlane.f32.xlu0 %v35
  %v37 = vpop.xlane.xlu0 %36
  %v38 = vsub.f32 %v33, %v37
  %v39 = vmul.f32 %v38, 1.442695
  %v40 = vpow.pop %v39
  %v41 = vsel %vm34, %v40, 0.0
  %42 = vadd.xlane.f32.xlu0 %v41
  %v43 = vpop.xlane.xlu0 %42
  %v44 = vlog2.pop %v43
  %v45 = vmul.f32 %v44, 0.6931472
  %v46 = vadd.f32 %v45, %v37
  %v47 = vmul.f32 %v24, %v33
  %v48 = vsel %vm34, %v47, 0.0
  %49 = vadd.xlane.f32.xlu0 %v48
  %v50 = vpop.xlane.xlu0 %49
  %v51 = vsub.f32 %v46, %v50
  %vm52 = vcmask 7168
  %53 = vst.msk [vmem:[%s3] sm:$0xff] %vm52, %v51
  // Predicated region
  $region14: #{tpu_custom_call.1} parent=0 // pred_check
    _
  $region15: #{tpu_custom_call.1} parent=0 // pred_check_branch
    %55 = sbr.rel (0) target = $region17
  $region16: #{tpu_custom_call.1} parent=0 // pred_region
    _
  $region17: #{tpu_custom_call.1} parent=0 // pred_fallthru
    _
  // Predicated region
  $region18: #{tpu_custom_call.1} parent=0 // pred_check
    _
  $region19: #{tpu_custom_call.1} parent=0 // pred_check_branch
    %57 = sbr.rel (0) target = $region21
  $region20: #{tpu_custom_call.1} parent=0 // pred_region
    _
  $region21: #{tpu_custom_call.1} parent=0 // pred_fallthru
    _

</llo_original>
